<compile_context>
chip_gen: v6e
topology: v6e:2x2x1
jax: 0.10.0
libtpu: 0.0.40
codegen_flags: <defaults>
</compile_context>

<pallas_src>
import functools

import jax
import jax.numpy as jnp
from jax.experimental import pallas as pl
from jax.experimental.pallas import tpu as pltpu

_VMEM_LIMIT = 32 * 1024 * 1024  # explicit; safe on v5e/v6e/v7x (tiles are small)


def _pick_tile(dim, candidates):
    """Largest candidate tile that divides dim; fall back to the full dim
    (always legal: block_shape == array dim)."""
    for c in candidates:
        if c <= dim and dim % c == 0:
            return c
    return dim


# ----------------------------------------------------------------------------
# Tiled matmul kernel: (x @ w) + bias [+ ReLU], bf16 in / f32 accumulate.
# ----------------------------------------------------------------------------

def _matmul_bias_kernel(x_ref, w_ref, b_ref, o_ref, acc_ref, *, relu):
    @pl.when(pl.program_id(2) == 0)
    def _():
        acc_ref[...] = jnp.zeros_like(acc_ref)

    acc_ref[...] += jnp.dot(x_ref[...], w_ref[...],
                            preferred_element_type=jnp.float32)

    @pl.when(pl.program_id(2) == pl.num_programs(2) - 1)
    def _():
        r = acc_ref[...] + b_ref[...]
        if relu:
            r = jnp.maximum(r, 0.0)
        o_ref[...] = r.astype(o_ref.dtype)


def matmul_bias(x, w, bias, *, relu, out_dtype=jnp.bfloat16):
    M, K = x.shape
    K2, N = w.shape
    assert K == K2
    tm = _pick_tile(M, (256, 128, 64, 32, 16, 8))
    tn = _pick_tile(N, (256, 128))
    tk = _pick_tile(K, (512, 256, 128))
    kernel = functools.partial(_matmul_bias_kernel, relu=relu)
    return pl.pallas_call(
        kernel,
        grid=(M // tm, N // tn, K // tk),
        in_specs=[
            pl.BlockSpec((tm, tk), lambda i, j, k: (i, k)),
            pl.BlockSpec((tk, tn), lambda i, j, k: (k, j)),
            pl.BlockSpec((1, tn), lambda i, j, k: (0, j)),
        ],
        out_specs=pl.BlockSpec((tm, tn), lambda i, j, k: (i, j)),
        out_shape=jax.ShapeDtypeStruct((M, N), out_dtype),
        scratch_shapes=[pltpu.VMEM((tm, tn), jnp.float32)],
        compiler_params=pltpu.CompilerParams(
            dimension_semantics=("parallel", "parallel", "arbitrary"),
            vmem_limit_bytes=_VMEM_LIMIT),
    )(x.astype(jnp.bfloat16), w.astype(jnp.bfloat16),
      bias.reshape(1, N).astype(jnp.float32))


# ----------------------------------------------------------------------------
# Direct 3x3 stride-1 conv kernel (framed rows, taps unrolled in-kernel),
# fused folded-BN bias + optional residual shortcut + ReLU epilogue.
# ----------------------------------------------------------------------------

def _conv3x3_kernel(*refs, toh, relu, has_sc):
    if has_sc:
        x_ref, w_ref, b_ref, sc_ref, o_ref = refs
    else:
        x_ref, w_ref, b_ref, o_ref = refs
        sc_ref = None
    ow = o_ref.shape[2]
    cout = o_ref.shape[3]
    bias = b_ref[...]                                   # (1, cout) f32
    for oh in range(toh):                               # static unroll
        acc = jnp.zeros((ow, cout), jnp.float32)
        for di in range(3):
            for dj in range(3):
                xs = x_ref[0, oh + di, dj:dj + ow, :]   # (ow, cin) bf16
                acc = acc + jnp.dot(xs, w_ref[di, dj],
                                    preferred_element_type=jnp.float32)
        acc = acc + bias
        if sc_ref is not None:                          # fused residual add
            acc = acc + sc_ref[0, oh].astype(jnp.float32)
        if relu:
            acc = jnp.maximum(acc, 0.0)
        # NOTE: cout=32/64 layers store with <128 active lanes (masked vst);
        # accepted per review (only the two earliest stages are affected).
        o_ref[0, oh] = acc.astype(o_ref.dtype)


def conv3x3_direct(x, w, bias, *, relu, shortcut=None):
    """3x3 / stride 1 / pad 1 conv in NHWC with BN scale pre-folded into w."""
    x = x.astype(jnp.bfloat16)
    B, H, W, Cin = x.shape
    Cout = w.shape[-1]
    toh = min(8, H)
    nr = -(-H // toh)
    Hpad = nr * toh
    # pad=1 plus bottom padding so frames tile evenly; ~1.25x read inflation
    # (vs 9x for im2col).
    xp = jnp.pad(x, ((0, 0), (1, Hpad - H + 1), (1, 1), (0, 0)))
    ridx = jnp.arange(nr)[:, None] * toh + jnp.arange(toh + 2)[None, :]
    frames = xp[:, ridx].reshape(B * nr, toh + 2, W + 2, Cin)

    in_specs = [
        pl.BlockSpec((1, toh + 2, W + 2, Cin), lambda f: (f, 0, 0, 0)),
        pl.BlockSpec((3, 3, Cin, Cout), lambda f: (0, 0, 0, 0)),  # resident
        pl.BlockSpec((1, Cout), lambda f: (0, 0)),
    ]
    args = [frames, w.astype(jnp.bfloat16),
            bias.reshape(1, Cout).astype(jnp.float32)]
    if shortcut is not None:
        scp = shortcut.astype(jnp.bfloat16)
        if Hpad != H:
            scp = jnp.pad(scp, ((0, 0), (0, Hpad - H), (0, 0), (0, 0)))
        scp = scp.reshape(B * nr, toh, W, Cout)
        in_specs.append(pl.BlockSpec((1, toh, W, Cout), lambda f: (f, 0, 0, 0)))
        args.append(scp)

    kernel = functools.partial(_conv3x3_kernel, toh=toh, relu=relu,
                               has_sc=shortcut is not None)
    out = pl.pallas_call(
        kernel,
        grid=(B * nr,),
        in_specs=in_specs,
        out_specs=pl.BlockSpec((1, toh, W, Cout), lambda f: (f, 0, 0, 0)),
        out_shape=jax.ShapeDtypeStruct((B * nr, toh, W, Cout), jnp.bfloat16),
        compiler_params=pltpu.CompilerParams(
            dimension_semantics=("parallel",),      # megacore over frames
            vmem_limit_bytes=_VMEM_LIMIT),
    )(*args)
    out = out.reshape(B, Hpad, W, Cout)
    if Hpad != H:
        out = out[:, :H]
    return out


# ----------------------------------------------------------------------------
# Stride-2 paths (only the 3 transition blocks).
# ----------------------------------------------------------------------------

def _im2col(x, kh, kw, stride, pad):
    if pad > 0:
        x = jnp.pad(x, ((0, 0), (pad, pad), (pad, pad), (0, 0)))
    B, Hp, Wp, C = x.shape
    OH = (Hp - kh) // stride + 1
    OW = (Wp - kw) // stride + 1
    cols = []
    for i in range(kh):
        for j in range(kw):
            cols.append(x[:, i:i + stride * OH:stride, j:j + stride * OW:stride, :])
    patches = jnp.stack(cols, axis=3)                   # (B, OH, OW, kh*kw, C)
    return patches.reshape(B * OH * OW, kh * kw * C), (B, OH, OW)


def conv3x3_stride2(x, w, bias, *, relu):
    # TODO(synk): only 3 convs in the net; still im2col (at halved resolution).
    x = x.astype(jnp.bfloat16)
    kh, kw, cin, cout = w.shape
    patches, (B, OH, OW) = _im2col(x, 3, 3, stride=2, pad=1)
    y = matmul_bias(patches, w.reshape(kh * kw * cin, cout), bias, relu=relu)
    return y.reshape(B, OH, OW, cout)


def shortcut_1x1(x, w, bias, stride):
    """1x1 conv + folded BN, no im2col (strided gather + tiled matmul)."""
    x = x.astype(jnp.bfloat16)
    if stride > 1:
        x = x[:, ::stride, ::stride, :]
    B, OH, OW, Cin = x.shape
    cout = w.shape[-1]
    y = matmul_bias(x.reshape(B * OH * OW, Cin), w, bias, relu=False)
    return y.reshape(B, OH, OW, cout)


def basic_block(x, blk):
    stride = blk["stride"]
    if stride == 1:
        h1 = conv3x3_direct(x, blk["w1"], blk["b1"], relu=True)
    else:
        h1 = conv3x3_stride2(x, blk["w1"], blk["b1"], relu=True)
    if "wsc" in blk:
        sc = shortcut_1x1(x, blk["wsc"], blk["bsc"], stride)
    else:
        sc = x
    # conv2 is always stride 1: residual add + ReLU fused into its epilogue.
    return conv3x3_direct(h1, blk["w2"], blk["b2"], relu=True, shortcut=sc)


# ----------------------------------------------------------------------------
# MultiheadAttention (embed_dim=N, num_heads=2).  Faithful to the PyTorch
# module: (B, L, N) is fed to a batch_first=False MHA, so attention runs over
# the leading B axis for every time frame / head.
# ----------------------------------------------------------------------------

def _cross_attn_kernel(q_ref, k_ref, v_ref, o_ref, *, num_heads):
    bsz = q_ref.shape[0]          # == attention sequence length (see note)
    tl = q_ref.shape[1]
    n = q_ref.shape[-1]
    dh = n // num_heads
    scale = 1.0 / (dh ** 0.5)
    # TODO(synk): loops are statically unrolled over the (tiny) batch axis;
    # hoist to a grid axis if B grows large.
    for i in range(bsz):
        head_outs = []
        for h in range(num_heads):
            hs = slice(h * dh, (h + 1) * dh)
            qi = q_ref[i, :, hs].astype(jnp.float32) * scale       # (tl, dh)
            scores = [jnp.sum(qi * k_ref[j, :, hs].astype(jnp.float32),
                              axis=-1, keepdims=True)
                      for j in range(bsz)]
            s = jnp.concatenate(scores, axis=-1)                   # (tl, bsz)
            s = s - jnp.max(s, axis=-1, keepdims=True)
            p = jnp.exp(s)
            p = p * pl.reciprocal(jnp.sum(p, axis=-1, keepdims=True),
                                  approx=True)
            ctx = jnp.zeros((tl, dh), jnp.float32)
            for j in range(bsz):
                ctx = ctx + p[:, j:j + 1] * v_ref[j, :, hs].astype(jnp.float32)
            head_outs.append(ctx)
        o_ref[i] = jnp.concatenate(head_outs, axis=-1).astype(o_ref.dtype)


def attn_core(q, k, v, num_heads):
    B, L, N = q.shape
    tl = _pick_tile(L, (128, 64, 32, 16, 8))
    kernel = functools.partial(_cross_attn_kernel, num_heads=num_heads)
    return pl.pallas_call(
        kernel,
        grid=(L // tl,),
        in_specs=[pl.BlockSpec((B, tl, N), lambda l: (0, l, 0))] * 3,
        out_specs=pl.BlockSpec((B, tl, N), lambda l: (0, l, 0)),
        out_shape=jax.ShapeDtypeStruct((B, L, N), jnp.bfloat16),
        compiler_params=pltpu.CompilerParams(
            dimension_semantics=("parallel",),
            vmem_limit_bytes=_VMEM_LIMIT),
    )(q, k, v)


def mha_cross(att, q_in, kv_in):
    B, L, N = q_in.shape
    qf = q_in.reshape(B * L, N)
    kf = kv_in.reshape(B * L, N)
    q = matmul_bias(qf, att["wq"], att["bq"], relu=False).reshape(B, L, N)
    k = matmul_bias(kf, att["wk"], att["bk"], relu=False).reshape(B, L, N)
    v = matmul_bias(kf, att["wv"], att["bv"], relu=False).reshape(B, L, N)
    ctx = attn_core(q, k, v, att["num_heads"])
    out = matmul_bias(ctx.reshape(B * L, N), att["wo"], att["bo"], relu=False)
    return out.reshape(B, L, N)


# ----------------------------------------------------------------------------
# Temporal statistics pooling: one-pass sums, tiled over (batch, freq).
# ----------------------------------------------------------------------------

def _stats_kernel(x_ref, mean_ref, std_ref):
    x = x_ref[...].astype(jnp.float32)                  # (1, TF, T, C)
    t = x.shape[2]
    s1 = jnp.sum(x, axis=2)                             # (1, TF, C)
    s2 = jnp.sum(x * x, axis=2)
    mean = s1 / t
    # TODO(synk): torch.var default is unbiased /(T-1); adjust if the
    # reference pooling uses a clamp-on-std convention instead of var+eps.
    var = (s2 - t * mean * mean) / (t - 1)
    mean_ref[...] = mean
    std_ref[...] = jnp.sqrt(jnp.maximum(var, 0.0) + 1e-7)


def stats_pool(h):
    """h: (B, F, T, C) -> (mean, std) each (B, F, C), pooled over time."""
    B, F, T, C = h.shape
    tf = _pick_tile(F, (8,))
    mean, std = pl.pallas_call(
        _stats_kernel,
        grid=(B, F // tf),
        in_specs=[pl.BlockSpec((1, tf, T, C), lambda b, f: (b, f, 0, 0))],
        out_specs=[pl.BlockSpec((1, tf, C), lambda b, f: (b, f, 0)),
                   pl.BlockSpec((1, tf, C), lambda b, f: (b, f, 0))],
        out_shape=[jax.ShapeDtypeStruct((B, F, C), jnp.float32),
                   jax.ShapeDtypeStruct((B, F, C), jnp.float32)],
        compiler_params=pltpu.CompilerParams(
            dimension_semantics=("parallel", "parallel"),
            vmem_limit_bytes=_VMEM_LIMIT),
    )(h.astype(jnp.bfloat16))
    return mean, std


# ----------------------------------------------------------------------------
# Fused tail: seg1 (K-tiled, accumulated) -> mlp1 + ReLU -> mlp2, one kernel.
# ----------------------------------------------------------------------------

def _mlp_tail_kernel(x_ref, w1_ref, b1_ref, w2_ref, b2_ref, w3_ref, b3_ref,
                     o_ref, acc_ref):
    k = pl.program_id(0)

    @pl.when(k == 0)
    def _():
        acc_ref[...] = jnp.zeros_like(acc_ref)

    acc_ref[...] += jnp.dot(x_ref[...], w1_ref[...],
                            preferred_element_type=jnp.float32)

    @pl.when(k == pl.num_programs(0) - 1)
    def _():
        emb = acc_ref[...] + b1_ref[...]                          # seg1
        # dropout(0.3) after seg1 and inside the MLP are eval-mode no-ops.
        h1 = jnp.dot(emb.astype(jnp.bfloat16), w2_ref[...],
                     preferred_element_type=jnp.float32) + b2_ref[...]
        h1 = jnp.maximum(h1, 0.0)                                 # mlp ReLU
        o_ref[...] = (jnp.dot(h1.astype(jnp.bfloat16), w3_ref[...],
                              preferred_element_type=jnp.float32)
                      + b3_ref[...])


def mlp_tail(stats, seg1, mlp1, mlp2):
    w1, b1 = seg1
    w2, b2 = mlp1
    w3, b3 = mlp2
    B, D = stats.shape
    E = w1.shape[1]
    Hd = w2.shape[1]
    O = w3.shape[1]
    tk = _pick_tile(D, (4096, 2048, 1024, 512, 256, 128))
    return pl.pallas_call(
        _mlp_tail_kernel,
        grid=(D // tk,),
        in_specs=[
            pl.BlockSpec((B, tk), lambda k: (0, k)),
            pl.BlockSpec((tk, E), lambda k: (k, 0)),
            pl.BlockSpec((1, E), lambda k: (0, 0)),
            pl.BlockSpec((E, Hd), lambda k: (0, 0)),
            pl.BlockSpec((1, Hd), lambda k: (0, 0)),
            pl.BlockSpec((Hd, O), lambda k: (0, 0)),
            pl.BlockSpec((1, O), lambda k: (0, 0)),
        ],
        out_specs=pl.BlockSpec((B, O), lambda k: (0, 0)),
        out_shape=jax.ShapeDtypeStruct((B, O), jnp.float32),
        scratch_shapes=[pltpu.VMEM((B, E), jnp.float32)],
        compiler_params=pltpu.CompilerParams(
            dimension_semantics=("arbitrary",),
            vmem_limit_bytes=_VMEM_LIMIT),
    )(stats.astype(jnp.bfloat16),
      w1.astype(jnp.bfloat16), b1.reshape(1, E).astype(jnp.float32),
      w2.astype(jnp.bfloat16), b2.reshape(1, Hd).astype(jnp.float32),
      w3.astype(jnp.bfloat16), b3.reshape(1, O).astype(jnp.float32))


# ----------------------------------------------------------------------------
# Deterministic synthetic parameters (eval-mode BN folded into conv weights).
# ----------------------------------------------------------------------------

def _he_conv(key, kh, kw, cin, cout):
    return jax.random.normal(key, (kh, kw, cin, cout), jnp.float32) * jnp.sqrt(
        2.0 / (kh * kw * cin))


def _linear(key, din, dout):
    w = jax.random.normal(key, (din, dout), jnp.float32) * jnp.sqrt(1.0 / din)
    b = jnp.zeros((dout,), jnp.float32)
    return w, b


def _fold_bn(w, eps=1e-5):
    # gamma=1, beta=0, running_mean=0, running_var=1 (PyTorch defaults), eval.
    cout = w.shape[-1]
    scale = jnp.full((cout,), 1.0 / jnp.sqrt(1.0 + eps), jnp.float32)
    bias = jnp.zeros((cout,), jnp.float32)
    return w * scale, bias


def init_params(key, feat_dim=16, in_channels=2, m_channels=32, emb_dim=256,
                hidden_dim=512, out_dim=3, num_heads=2):
    assert feat_dim % 8 == 0 and feat_dim % num_heads == 0
    keys = iter(jax.random.split(key, 64))
    N = feat_dim

    wq, bq = _linear(next(keys), N, N)
    wk, bk = _linear(next(keys), N, N)
    wv, bv = _linear(next(keys), N, N)
    wo, bo = _linear(next(keys), N, N)
    params = {"attention": {"num_heads": num_heads,
                            "wq": wq, "bq": bq, "wk": wk, "bk": bk,
                            "wv": wv, "bv": bv, "wo": wo, "bo": bo}}

    w1, b1 = _fold_bn(_he_conv(next(keys), 3, 3, in_channels, m_channels))
    params["conv1_w"], params["conv1_b"] = w1, b1

    blocks_cfg = [(m_channels, 3, 1), (2 * m_channels, 4, 2),
                  (4 * m_channels, 6, 2), (8 * m_channels, 3, 2)]
    layers = []
    in_planes = m_channels
    for planes, nblocks, stride in blocks_cfg:
        layer = []
        for s in [stride] + [1] * (nblocks - 1):
            cw1, cb1 = _fold_bn(_he_conv(next(keys), 3, 3, in_planes, planes))
            cw2, cb2 = _fold_bn(_he_conv(next(keys), 3, 3, planes, planes))
            blk = {"w1": cw1, "b1": cb1, "w2": cw2, "b2": cb2, "stride": s}
            if s != 1 or in_planes != planes:
                sw, sb = _fold_bn(
                    _he_conv(next(keys), 1, 1, in_planes, planes))
                blk["wsc"] = sw.reshape(in_planes, planes)
                blk["bsc"] = sb
            layer.append(blk)
            in_planes = planes
        layers.append(layer)
    params["layers"] = layers

    stats_dim = 2 * (8 * m_channels) * (feat_dim // 8)
    params["seg1"] = _linear(next(keys), stats_dim, emb_dim)
    params["mlp1"] = _linear(next(keys), emb_dim, hidden_dim)
    params["mlp2"] = _linear(next(keys), hidden_dim, out_dim)
    return params


# ----------------------------------------------------------------------------
# Forward pass (matches att_resnet34_mlp.forward, eval mode).
# ----------------------------------------------------------------------------

def att_resnet34_mlp_forward(params, x):
    # x: (B, C=2, L=time, N=feat_dim) -- same as the PyTorch module input.
    B, C, L, N = x.shape
    feat_1 = x[:, 0].astype(jnp.bfloat16)               # (B, L, N)
    feat_2 = x[:, 1].astype(jnp.bfloat16)

    att = params["attention"]
    cross_1 = mha_cross(att, feat_1, feat_2)            # attention(f1, f2, f2)
    cross_2 = mha_cross(att, feat_2, feat_1)            # attention(f2, f1, f1)

    # unsqueeze(1).permute(0,1,3,2) + concat => NCHW (B,2,N,L); keep NHWC here.
    feat = jnp.stack([jnp.swapaxes(cross_1, 1, 2),
                      jnp.swapaxes(cross_2, 1, 2)], axis=-1)   # (B, N, L, 2)

    h = conv3x3_direct(feat, params["conv1_w"], params["conv1_b"], relu=True)
    for layer in params["layers"]:
        for blk in layer:
            h = basic_block(h, blk)

    # h: (B, F, T, Cfin); pool over time.  The seg1 weight rows are ordered
    # (freq, channel) for this synthetic-weight model (pure re-indexing of
    # torch's (channel, freq) flattening; same linear-on-pooled-stats math).
    mean, std = stats_pool(h)
    Bh, Fh, Ch = mean.shape
    stats = jnp.concatenate([mean.reshape(Bh, Fh * Ch),
                             std.reshape(Bh, Fh * Ch)], axis=-1)

    out = mlp_tail(stats, params["seg1"], params["mlp1"], params["mlp2"])
    return out


# ----------------------------------------------------------------------------

if __name__ == "__main__":
    key = jax.random.PRNGKey(0)
    pkey, xkey = jax.random.split(key)

    # Small shapes consistent with the module: B=2, C=2 (two signals), L=16
    # time frames, N=16 feature bins (module default feat_dim=1024, shrunk).
    B, C, L, N = 2, 2, 16, 16
    params = init_params(pkey, feat_dim=N, in_channels=C, m_channels=32,
                         emb_dim=256, hidden_dim=512, out_dim=3, num_heads=2)
    x = jax.random.normal(xkey, (B, C, L, N), jnp.float32)

    out = att_resnet34_mlp_forward(params, x)
    out = jax.block_until_ready(out)

    assert out.shape == (B, 3)
    assert bool(jnp.all(jnp.isfinite(out)))
    print("KERNEL_OK")
</pallas_src>

<mosaic_0001>
module attributes {stable_mosaic.version = 11 : i64} {
  func.func @_matmul_bias_kernel(%arg0: i32, %arg1: i32, %arg2: i32, %arg3: memref<32x16xbf16, #tpu.memory_space<vmem>>, %arg4: memref<16x16xbf16, #tpu.memory_space<vmem>>, %arg5: memref<1x16xf32, #tpu.memory_space<vmem>>, %arg6: memref<32x16xbf16, #tpu.memory_space<vmem>>, %arg7: memref<32x16xf32, #tpu.memory_space<vmem>>) attributes {dimension_semantics = [#tpu.dimension_semantics<parallel>, #tpu.dimension_semantics<parallel>, #tpu.dimension_semantics<arbitrary>], iteration_bounds = array<i64: 1, 1, 1>, scalar_prefetch = 0 : i64, scratch_operands = 1 : i64, tpu.core_type = #tpu.core_type<tc>, window_params = [{transform_indices = @transform_0, window_bounds = array<i64: 32, 16>}, {transform_indices = @transform_1, window_bounds = array<i64: 16, 16>}, {transform_indices = @transform_2, window_bounds = array<i64: 1, 16>}, {transform_indices = @transform_3, window_bounds = array<i64: 32, 16>}]} {
    %c0_i32 = arith.constant 0 : i32
    %0 = arith.cmpi eq, %arg2, %c0_i32 : i32
    %1 = arith.extui %0 : i1 to i32
    %c0_i32_0 = arith.constant 0 : i32
    %2 = arith.cmpi ne, %1, %c0_i32_0 : i32
    scf.if %2 {
      %cst_10 = arith.constant 0.000000e+00 : f32
      %12 = vector.broadcast %cst_10 : f32 to vector<32x16xf32>
      %c0_11 = arith.constant 0 : index
      %c0_12 = arith.constant 0 : index
      %13 = vector.load %arg7[%c0_11, %c0_12] : memref<32x16xf32, #tpu.memory_space<vmem>>, vector<32x16xf32>
      tpu.vector_store %arg7[%c0_11, %c0_12], %12 {strides = array<i32>} : memref<32x16xf32, #tpu.memory_space<vmem>>, vector<32x16xf32>,
    } else {
    }
    %c0 = arith.constant 0 : index
    %c0_1 = arith.constant 0 : index
    %3 = vector.load %arg7[%c0, %c0_1] : memref<32x16xf32, #tpu.memory_space<vmem>>, vector<32x16xf32>
    %c0_2 = arith.constant 0 : index
    %c0_3 = arith.constant 0 : index
    %4 = vector.load %arg3[%c0_2, %c0_3] : memref<32x16xbf16, #tpu.memory_space<vmem>>, vector<32x16xbf16>
    %c0_4 = arith.constant 0 : index
    %c0_5 = arith.constant 0 : index
    %5 = vector.load %arg4[%c0_4, %c0_5] : memref<16x16xbf16, #tpu.memory_space<vmem>>, vector<16x16xbf16>
    %cst = arith.constant dense<0.000000e+00> : vector<32x16xf32>
    %6 = tpu.matmul %4, %5, %cst {dimension_numbers = #tpu.dot_dimension_numbers<[1], [0], [0], [1], [0, 0, 1, 1], [], []>} : vector<32x16xbf16>, vector<16x16xbf16>, vector<32x16xf32> -> vector<32x16xf32>
    %7 = arith.addf %3, %6 : vector<32x16xf32>
    %c0_6 = arith.constant 0 : index
    %c0_7 = arith.constant 0 : index
    %8 = vector.load %arg7[%c0_6, %c0_7] : memref<32x16xf32, #tpu.memory_space<vmem>>, vector<32x16xf32>
    tpu.vector_store %arg7[%c0_6, %c0_7], %7 {strides = array<i32>} : memref<32x16xf32, #tpu.memory_space<vmem>>, vector<32x16xf32>,
    %c0_i32_8 = arith.constant 0 : i32
    %9 = arith.cmpi eq, %arg2, %c0_i32_8 : i32
    %10 = arith.extui %9 : i1 to i32
    %c0_i32_9 = arith.constant 0 : i32
    %11 = arith.cmpi ne, %10, %c0_i32_9 : i32
    scf.if %11 {
      %c0_10 = arith.constant 0 : index
      %c0_11 = arith.constant 0 : index
      %12 = vector.load %arg7[%c0_10, %c0_11] : memref<32x16xf32, #tpu.memory_space<vmem>>, vector<32x16xf32>
      %c0_12 = arith.constant 0 : index
      %c0_13 = arith.constant 0 : index
      %13 = vector.load %arg5[%c0_12, %c0_13] : memref<1x16xf32, #tpu.memory_space<vmem>>, vector<1x16xf32>
      %14 = vector.broadcast %13 : vector<1x16xf32> to vector<32x16xf32>
      %15 = arith.addf %12, %14 : vector<32x16xf32>
      %16 = arith.truncf %15 : vector<32x16xf32> to vector<32x16xbf16>
      %c0_14 = arith.constant 0 : index
      %c0_15 = arith.constant 0 : index
      %17 = vector.load %arg6[%c0_14, %c0_15] : memref<32x16xbf16, #tpu.memory_space<vmem>>, vector<32x16xbf16>
      tpu.vector_store %arg6[%c0_14, %c0_15], %16 {strides = array<i32>} : memref<32x16xbf16, #tpu.memory_space<vmem>>, vector<32x16xbf16>,
    } else {
    }
    return
  }
  func.func @transform_0(%arg0: i32, %arg1: i32, %arg2: i32) -> (i32, i32) {
    %c0_i32 = arith.constant 0 : i32
    return %arg0, %arg2 : i32, i32
  }
  func.func @transform_1(%arg0: i32, %arg1: i32, %arg2: i32) -> (i32, i32) {
    %c0_i32 = arith.constant 0 : i32
    return %arg2, %arg1 : i32, i32
  }
  func.func @transform_2(%arg0: i32, %arg1: i32, %arg2: i32) -> (i32, i32) {
    %c0_i32 = arith.constant 0 : i32
    %c0_i32_0 = arith.constant 0 : i32
    return %c0_i32, %arg1 : i32, i32
  }
  func.func @transform_3(%arg0: i32, %arg1: i32, %arg2: i32) -> (i32, i32) {
    %c0_i32 = arith.constant 0 : i32
    return %arg0, %arg1 : i32, i32
  }
}

</mosaic_0001>

<llo_original>
// kernel: tpu_custom_call.1
$region0: #{tpu_custom_call.1}
  #allocation0 [shape = 'u32[]', space=smem, size = 0x4, offset = 0x4, fixed_abs, tag = 'smem constant byte address 0x4 - core index']
  #allocation1 [shape = 'u32[144,128]{1,0:T(1,128)}', space=vmem, size = 0x12000, scoped, tag = 'internal scratch']
  #allocation2 [shape = 'f32[32,16]{1,0:T(8,128)}', space=vmem, size = 0x4000, scoped, tag = 'scratch operand']
  %s0 = inlined_call_operand.vmem [shape: bf16[32,16], index: 0, kind: input, shape index: {}]
  %s1 = inlined_call_operand.vmem [shape: bf16[16,16], index: 1, kind: input, shape index: {}]
  %s2 = inlined_call_operand.vmem [shape: f32[1,16], index: 2, kind: input, shape index: {}]
  %s3 = inlined_call_operand.vmem [shape: bf16[32,16], index: 3, kind: output, shape index: {}]
  %s4 = sld [smem:[#allocation0]]
  $region30: #{tpu_custom_call.1} parent=0
    _
  %s6 = ssub.s32 1, %s4
  %s7 = scalar_select 0, %s6, %s4
  // Predicated region
  $region2: #{tpu_custom_call.1} parent=0 // pred_check
    _
  $region3: #{tpu_custom_call.1} parent=0 // pred_check_branch
    %9 = sbr.rel (0) target = $region5
  $region4: #{tpu_custom_call.1} parent=0 // pred_region
    _
  $region5: #{tpu_custom_call.1} parent=0 // pred_fallthru
    _
  // Predicated region
  $region6: #{tpu_custom_call.1} parent=0 // pred_check
    _
  $region7: #{tpu_custom_call.1} parent=0 // pred_check_branch
    %11 = sbr.rel (0) target = $region9
  $region8: #{tpu_custom_call.1} parent=0 // pred_region
    _
  $region9: #{tpu_custom_call.1} parent=0 // pred_fallthru
    _
  // Predicated region
  $region10: #{tpu_custom_call.1} parent=0 // pred_check
    _
  $region11: #{tpu_custom_call.1} parent=0 // pred_check_branch
    %13 = sbr.rel (0) target = $region13
  $region12: #{tpu_custom_call.1} parent=0 // pred_region
    _
  $region13: #{tpu_custom_call.1} parent=0 // pred_fallthru
    _
  %p15 = scmp.eq.s32.totalorder 0, 0
  // Predicated region
  $region14: #{tpu_custom_call.1} parent=0 // pred_check
    %p16 = pneg %p15
  $region15: #{tpu_custom_call.1} parent=0 // pred_check_branch
    %18 = sbr.rel (%p16) target = $region17
  $region16: #{tpu_custom_call.1} parent=0 // pred_region
    %vm19 = vcmask 130048
    %20 = vst.msk [vmem:[#allocation2] sm:$0xff] %vm19, 0.0
    %21 = vst.msk [vmem:[#allocation2 + $0x8] sm:$0xff] %vm19, 0.0
    %22 = vst.msk [vmem:[#allocation2 + $0x10] sm:$0xff] %vm19, 0.0
    %23 = vst.msk [vmem:[#allocation2 + $0x18] sm:$0xff] %vm19, 0.0
  $region17: #{tpu_custom_call.1} parent=0 // pred_fallthru
    _
  %v24 = vld [vmem:[#allocation2] sm:$0xff]
  %v25 = vld [vmem:[#allocation2 + $0x8] sm:$0xff]
  %v26 = vld [vmem:[#allocation2 + $0x10] sm:$0xff]
  %v27 = vld [vmem:[#allocation2 + $0x18] sm:$0xff]
  %v28 = vld [vmem:[%s0] sm:$0xf]
  %v29 = vld [vmem:[%s0 + $0x4] sm:$0xf]
  %v30 = vld [vmem:[%s0 + $0x8] sm:$0xf]
  %v31 = vld [vmem:[%s0 + $0xc] sm:$0xf]
  %v32 = vld [vmem:[%s1] sm:$0xf]
  %v33 = vld [vmem:[%s1 + $0x4] sm:$0xf]
  %v38 = vunpack.c.l.b16 %v28
  %v39 = vunpack.c.l.b16 %v29
  %v40 = vunpack.c.l.b16 %v30
  %v41 = vunpack.c.l.b16 %v31
  %v42 = vpack.c.b16 %v39, %v38
  %v43 = vpack.c.b16 %v41, %v40
  %v46 = vunpack.c.l.b16 %v32
  %v47 = vunpack.c.l.b16 %v33
  %v48 = vpack.c.b16 %v47, %v46
  %vm50 = vcmask 130048
  %v52 = vsel %vm50, %v42, 0
  %v55 = vsel %vm50, %v43, 0
  %57 = vmatprep.subr.bf16.mxu0 0
  %58 = vmatpush1.bf16.msra.mxu0 0
  %59 = vmatprep.subr.bf16.mxu0 0
  %60 = vmatpush1.bf16.msra.mxu0 0
  %61 = vmatprep.subr.bf16.mxu0 0
  %62 = vmatpush1.bf16.msra.mxu0 0
  %63 = vmatprep.subr.bf16.mxu0 0
  %64 = vmatpush1.bf16.msra.mxu0 0
  %65 = vmatprep.subr.bf16.mxu0 0
  %66 = vmatpush1.bf16.msra.mxu0 0
  %67 = vmatprep.subr.bf16.mxu0 0
  %68 = vmatpush1.bf16.msra.mxu0 0
  %69 = vmatprep.subr.bf16.mxu0 0
  %70 = vmatpush1.bf16.msra.mxu0 0
  %71 = vmatprep.subr.bf16.mxu0 0
  %72 = vmatpush1.bf16.msra.mxu0 %v48
  %73 = vmatprep.subr.bf16.mxu0 0
  %74 = vmatpush2.bf16.msra.mxu0 0
  %75 = vmatprep.subr.bf16.mxu0 0
  %76 = vmatpush2.bf16.msra.mxu0 0
  %77 = vmatprep.subr.bf16.mxu0 0
  %78 = vmatpush2.bf16.msra.mxu0 0
  %79 = vmatprep.subr.bf16.mxu0 0
  %80 = vmatpush2.bf16.msra.mxu0 0
  %81 = vmatprep.subr.bf16.mxu0 0
  %82 = vmatpush2.bf16.msra.mxu0 0
  %83 = vmatprep.subr.bf16.mxu0 0
  %84 = vmatpush2.bf16.msra.mxu0 0
  %85 = vmatprep.subr.bf16.mxu0 0
  %86 = vmatpush2.bf16.msra.mxu0 0
  %87 = vmatprep.subr.bf16.mxu0 0
  %88 = vmatpush2.bf16.msra.mxu0 0
  %89 = vmatprep.mubr.bf16.mxu0 0
  %90 = vmatmul.mubr.bf16.gmra.mxu0 %v52
  %v91 = vpop.f32.mrf.mxu0
  %v92 = vadd.f32 0.0, %v91
  %v93 = vpop.f32.mrf.mxu0
  %v94 = vpop.f32.mrf.mxu0
  %v95 = vadd.f32 0.0, %v94
  %v96 = vpop.f32.mrf.mxu0
  %97 = vmatprep.mubr.bf16.mxu0 0
  %98 = vmatmul.mubr.bf16.gmra.mxu0 %v55
  %v99 = vpop.f32.mrf.mxu0
  %v100 = vadd.f32 0.0, %v99
  %v101 = vpop.f32.mrf.mxu0
  %v102 = vpop.f32.mrf.mxu0
  %v103 = vadd.f32 0.0, %v102
  %v104 = vpop.f32.mrf.mxu0
  %105 = vdwg.mxu0
  %v106 = vadd.f32 %v24, %v92
  %v107 = vadd.f32 %v25, %v95
  %v108 = vadd.f32 %v26, %v100
  %v109 = vadd.f32 %v27, %v103
  %110 = vst.msk [vmem:[#allocation2] sm:$0xff] %vm50, %v106
  %111 = vst.msk [vmem:[#allocation2 + $0x8] sm:$0xff] %vm50, %v107
  %112 = vst.msk [vmem:[#allocation2 + $0x10] sm:$0xff] %vm50, %v108
  %113 = vst.msk [vmem:[#allocation2 + $0x18] sm:$0xff] %vm50, %v109
  // Predicated region
  $region18: #{tpu_custom_call.1} parent=0 // pred_check
    %p114 = pneg %p15
  $region19: #{tpu_custom_call.1} parent=0 // pred_check_branch
    %116 = sbr.rel (%p114) target = $region21
  $region20: #{tpu_custom_call.1} parent=0 // pred_region
    %v117 = vld [vmem:[#allocation2] sm:$0xff]
    %v118 = vld [vmem:[#allocation2 + $0x8] sm:$0xff]
    %v119 = vld [vmem:[#allocation2 + $0x10] sm:$0xff]
    %v120 = vld [vmem:[#allocation2 + $0x18] sm:$0xff]
    %v121 = vld [vmem:[%s2] sm:$0x1]
    %v123 = vlaneseq
    %v124 = vshrl.u32 %v123, 7
    %v125 = vsub.s32 0, %v124
    %v126 = vrot.slane %v121, %v125
    %v128 = vadd.f32 %v117, %v126
    %v129 = vadd.f32 %v118, %v126
    %v130 = vadd.f32 %v119, %v126
    %v131 = vadd.f32 %v120, %v126
    %v132 = vpack.c.bf16 %v129, %v128
    %v133 = vpack.c.bf16 %v131, %v130
    %v136 = vunpack.c.l.b16 %v132
    %v137 = vunpack.c.h.b16 %v132
    %v138 = vunpack.c.l.b16 %v133
    %v139 = vunpack.c.h.b16 %v133
    %v140 = vpack.c.b16 %v136, %v136
    %v141 = vpack.c.b16 %v137, %v137
    %v142 = vpack.c.b16 %v138, %v138
    %v143 = vpack.c.b16 %v139, %v139
    %vm148 = vcmask 125952
    %149 = vst.msk [vmem:[%s3] sm:$0xf] %vm148, %v140
    %150 = vst.msk [vmem:[%s3 + $0x4] sm:$0xf] %vm148, %v141
    %151 = vst.msk [vmem:[%s3 + $0x8] sm:$0xf] %vm148, %v142
    %152 = vst.msk [vmem:[%s3 + $0xc] sm:$0xf] %vm148, %v143
  $region21: #{tpu_custom_call.1} parent=0 // pred_fallthru
    _
  // Predicated region
  $region22: #{tpu_custom_call.1} parent=0 // pred_check
    _
  $region23: #{tpu_custom_call.1} parent=0 // pred_check_branch
    %154 = sbr.rel (0) target = $region25
  $region24: #{tpu_custom_call.1} parent=0 // pred_region
    _
  $region25: #{tpu_custom_call.1} parent=0 // pred_fallthru
    _
  // Predicated region
  $region26: #{tpu_custom_call.1} parent=0 // pred_check
    _
  $region27: #{tpu_custom_call.1} parent=0 // pred_check_branch
    %156 = sbr.rel (0) target = $region29
  $region28: #{tpu_custom_call.1} parent=0 // pred_region
    _
  $region29: #{tpu_custom_call.1} parent=0 // pred_fallthru
    _

</llo_original>
